<compile_context>
chip_gen: v7x
topology: tpu7x:2x2x1
jax: 0.10.0
libtpu: 0.0.40
codegen_flags: <defaults>
</compile_context>

<pallas_src>
import functools

import jax
import jax.numpy as jnp
from jax.experimental import pallas as pl
from jax.experimental.pallas import tpu as pltpu


def ae_backbone_kernel(x_ref, w1_ref, w2_ref, wd_ref, vec_ref, o_ref, *, mm_dtype):
    """Fused FE (Linear-ReLU-Linear) -> LayerNorm -> diff-Linear -> sigmoid.

    x_ref   : (TR, IN)   input rows (one tile of the padded row slab)
    w1_ref  : (IN, D)    FE first linear weight
    w2_ref  : (D, D)     FE second linear weight
    wd_ref  : (D, 2m)    output projection "difference" weight (col j - col j^1)
    vec_ref : (8, W)     packed vectors: [b1; b2; gamma; beta; b_diff; 0; 0; 0]
    o_ref   : (TR, 2m)   pairwise-softmaxed logits
    """
    D = w1_ref.shape[1]
    two_m = wd_ref.shape[1]

    vecs = vec_ref[...]                       # (8, W) f32
    b1 = vecs[0:1, :D]
    b2 = vecs[1:2, :D]
    g = vecs[2:3, :D]
    be = vecs[3:4, :D]
    bd = vecs[4:5, :two_m]

    x = x_ref[...]                            # already mm_dtype (cast wrapper-side)

    # ---- FE: Linear -> ReLU -> Linear (accumulate in f32) ----
    h = jnp.dot(x, w1_ref[...], preferred_element_type=jnp.float32) + b1
    h = jnp.maximum(h, 0.0)
    h = jnp.dot(h.astype(mm_dtype), w2_ref[...],
                preferred_element_type=jnp.float32) + b2

    # ---- LayerNorm(d_model), eps = 1e-5 (two-pass, f32) ----
    mu = jnp.mean(h, axis=-1, keepdims=True)
    d = h - mu
    var = jnp.mean(d * d, axis=-1, keepdims=True)
    hn = d * jax.lax.rsqrt(var + 1e-5) * g + be

    # ---- single "difference" projection: z_k = logits_k - logits_{k^1} ----
    z = jnp.dot(hn.astype(mm_dtype), wd_ref[...],
                preferred_element_type=jnp.float32) + bd

    # ---- 2-way softmax over column pairs == sigmoid(z), stable form ----
    ez = jnp.exp(-jnp.abs(z))
    s = jnp.where(z >= 0.0, 1.0, ez) / (1.0 + ez)
    o_ref[...] = s.astype(o_ref.dtype)


def _pick_row_tile(R, sub):
    """Rows per grid step.

    Big tiles amortize the ~0.35 us per-grid-step overhead; the cap and the
    ceil(R/2) floor keep >= 2 'parallel' steps whenever possible so the grid
    can shard across v7x's two TensorCores.  Must be a multiple of the sublane
    tile (8 for f32, 16 for bf16).  VMEM is a non-issue: even 2048 rows of
    (IN + D + 2m) f32 is only a few hundred KB.
    """
    cap = 2048
    half = -(-R // 2)                          # ceil(R / 2)
    t = max(sub, min(cap, half))
    return ((t + sub - 1) // sub) * sub


def ae_backbone_forward(src, params, *, m, row_tile=None, mm_dtype=jnp.float32):
    """src: (B, L, input_size) float32 -> output (B, L*m, 2) float32.

    mm_dtype=jnp.bfloat16 halves the streamed HBM bytes (cast is done here,
    wrapper-side, before the pallas_call) and doubles MXU rate on v6e/v7x;
    default f32 keeps exact parity with the PyTorch reference.  Keep f32 on
    v5e (no bf16 VPU/EUP; the matmuls were never the bottleneck there).
    """
    B, L, IN = src.shape
    D = params["w1"].shape[1]
    two_m = 2 * m
    R = B * L

    # "Difference" output projection: for the pairwise 2-way softmax only
    # logits_k - logits_{k^1} matters, so fold both projections into one.
    idx = jnp.arange(two_m)
    w_diff = params["wo"] - params["wo"][:, idx ^ 1]
    b_diff = params["bo"] - params["bo"][:, idx ^ 1]

    # Pack the five tiny per-feature vectors into one (8, W) slab -> one DMA.
    W = max(D, two_m)
    def _padw(v):
        v = v.astype(jnp.float32)
        return jnp.pad(v, ((0, 0), (0, W - v.shape[1])))
    vecs = jnp.concatenate(
        [_padw(params["b1"]), _padw(params["b2"]),
         _padw(params["gamma"]), _padw(params["beta"]),
         _padw(b_diff), jnp.zeros((3, W), jnp.float32)], axis=0)  # (8, W)

    # Cast the streamed arrays wrapper-side so bf16 actually halves DMA bytes.
    x2d = src.reshape(R, IN).astype(mm_dtype)
    w1 = params["w1"].astype(mm_dtype)
    w2 = params["w2"].astype(mm_dtype)
    wd = w_diff.astype(mm_dtype)

    sub = 16 if mm_dtype == jnp.bfloat16 else 8
    if row_tile is None:
        row_tile = _pick_row_tile(R, sub)
    n_tiles = pl.cdiv(R, row_tile)
    Rp = n_tiles * row_tile
    if Rp != R:
        # Padded rows are zeros (LN of a constant row stays finite); sliced off below.
        x2d = jnp.pad(x2d, ((0, Rp - R), (0, 0)))

    full = lambda i: (0, 0)
    kernel = functools.partial(ae_backbone_kernel, mm_dtype=mm_dtype)

    out2d = pl.pallas_call(
        kernel,
        out_shape=jax.ShapeDtypeStruct((Rp, two_m), jnp.float32),
        grid=(n_tiles,),
        in_specs=[
            pl.BlockSpec((row_tile, IN), lambda i: (i, 0)),   # x rows
            pl.BlockSpec((IN, D), full),                      # w1
            pl.BlockSpec((D, D), full),                       # w2
            pl.BlockSpec((D, two_m), full),                   # w_diff
            pl.BlockSpec((8, W), full),                       # packed b1/b2/g/b/b_diff
        ],
        # TODO(synk): out last dim = 2m (=4) is lane-sparse; relayout to a
        # lane-dense slab only if writeback shows up in a profile at large R.
        out_specs=pl.BlockSpec((row_tile, two_m), lambda i: (i, 0)),
        compiler_params=pltpu.CompilerParams(
            dimension_semantics=("parallel",)),
    )(x2d, w1, w2, wd, vecs)

    # equivalent of enc_out.view(batch, ell * m, 2) with softmax already applied
    return out2d[:R].reshape(B, L * m, 2)


def ae_backbone_ref(src, params, *, m):
    """Pure-JAX reference (mirrors the PyTorch 'rec' / multclass=False path)."""
    B, L, IN = src.shape
    x = src.reshape(B * L, IN)
    h = jnp.maximum(x @ params["w1"] + params["b1"], 0.0)
    h = h @ params["w2"] + params["b2"]
    mu = h.mean(-1, keepdims=True)
    var = ((h - mu) ** 2).mean(-1, keepdims=True)
    hn = (h - mu) / jnp.sqrt(var + 1e-5) * params["gamma"] + params["beta"]
    logits = hn @ params["wo"] + params["bo"]
    logits = logits.reshape(B, L * m, 2)
    return jax.nn.softmax(logits, axis=-1)


def init_params(key, input_size, d_model, m):
    """Deterministic synthetic parameters (matches module's layer shapes)."""
    ks = jax.random.split(key, 6)
    scale1 = 1.0 / jnp.sqrt(input_size)
    scale2 = 1.0 / jnp.sqrt(d_model)
    return {
        "w1": jax.random.normal(ks[0], (input_size, d_model), jnp.float32) * scale1,
        "b1": jax.random.normal(ks[1], (1, d_model), jnp.float32) * 0.01,
        "w2": jax.random.normal(ks[2], (d_model, d_model), jnp.float32) * scale2,
        "b2": jax.random.normal(ks[3], (1, d_model), jnp.float32) * 0.01,
        "gamma": jnp.ones((1, d_model), jnp.float32),
        "beta": jnp.zeros((1, d_model), jnp.float32),
        "wo": jax.random.normal(ks[4], (d_model, 2 * m), jnp.float32) * scale2,
        "bo": jax.random.normal(ks[5], (1, 2 * m), jnp.float32) * 0.01,
    }


if __name__ == "__main__":
    # ae_backbone(arch, mod='rec', input_size=4 (=args.T), m=2 (=args.q),
    #             d_model=32, dropout=0.0, multclass=False, NS_model=1)
    B, L, INPUT_SIZE, M, D_MODEL = 2, 8, 4, 2, 32

    key = jax.random.PRNGKey(0)
    k_in, k_par = jax.random.split(key)
    src = jax.random.normal(k_in, (B, L, INPUT_SIZE), jnp.float32)
    params = init_params(k_par, INPUT_SIZE, D_MODEL, M)

    out = ae_backbone_forward(src, params, m=M)
    out = jax.block_until_ready(out)

    assert out.shape == (B, L * M, 2), out.shape
    # 2-way softmax rows must sum to 1
    assert jnp.allclose(out.sum(-1), 1.0, atol=1e-5)
    # match the pure-JAX reference (the w_diff / sigmoid rewrite is exact for
    # the 2-way softmax; parity assert is only valid on the f32 path)
    ref = ae_backbone_ref(src, params, m=M)
    assert jnp.allclose(out, ref, atol=1e-5, rtol=1e-5), float(
        jnp.max(jnp.abs(out - ref)))

    print("KERNEL_OK")
</pallas_src>

<mosaic_0001>
module attributes {stable_mosaic.version = 11 : i64} {
  func.func @ae_backbone_kernel(%arg0: i32, %arg1: memref<8x4xf32, #tpu.memory_space<vmem>>, %arg2: memref<4x32xf32, #tpu.memory_space<vmem>>, %arg3: memref<32x32xf32, #tpu.memory_space<vmem>>, %arg4: memref<32x4xf32, #tpu.memory_space<vmem>>, %arg5: memref<8x32xf32, #tpu.memory_space<vmem>>, %arg6: memref<8x4xf32, #tpu.memory_space<vmem>>) attributes {dimension_semantics = [#tpu.dimension_semantics<parallel>], iteration_bounds = array<i64: 2>, scalar_prefetch = 0 : i64, scratch_operands = 0 : i64, tpu.core_type = #tpu.core_type<tc>, window_params = [{transform_indices = @transform_0, window_bounds = array<i64: 8, 4>}, {pipeline_mode = #tpu.pipeline_mode<synchronous>, transform_indices = @transform_1, window_bounds = array<i64: 4, 32>}, {pipeline_mode = #tpu.pipeline_mode<synchronous>, transform_indices = @transform_2, window_bounds = array<i64: 32, 32>}, {pipeline_mode = #tpu.pipeline_mode<synchronous>, transform_indices = @transform_3, window_bounds = array<i64: 32, 4>}, {pipeline_mode = #tpu.pipeline_mode<synchronous>, transform_indices = @transform_4, window_bounds = array<i64: 8, 32>}, {transform_indices = @transform_5, window_bounds = array<i64: 8, 4>}]} {
    %c0 = arith.constant 0 : index
    %c0_0 = arith.constant 0 : index
    %0 = vector.load %arg5[%c0, %c0_0] : memref<8x32xf32, #tpu.memory_space<vmem>>, vector<8x32xf32>
    %1 = vector.extract_strided_slice %0 {offsets = [0, 0], sizes = [1, 32], strides = [1, 1]} : vector<8x32xf32> to vector<1x32xf32>
    %2 = vector.extract_strided_slice %0 {offsets = [1, 0], sizes = [1, 32], strides = [1, 1]} : vector<8x32xf32> to vector<1x32xf32>
    %3 = vector.extract_strided_slice %0 {offsets = [2, 0], sizes = [1, 32], strides = [1, 1]} : vector<8x32xf32> to vector<1x32xf32>
    %4 = vector.extract_strided_slice %0 {offsets = [3, 0], sizes = [1, 32], strides = [1, 1]} : vector<8x32xf32> to vector<1x32xf32>
    %5 = vector.extract_strided_slice %0 {offsets = [4, 0], sizes = [1, 4], strides = [1, 1]} : vector<8x32xf32> to vector<1x4xf32>
    %c0_1 = arith.constant 0 : index
    %c0_2 = arith.constant 0 : index
    %6 = vector.load %arg1[%c0_1, %c0_2] : memref<8x4xf32, #tpu.memory_space<vmem>>, vector<8x4xf32>
    %c0_3 = arith.constant 0 : index
    %c0_4 = arith.constant 0 : index
    %7 = vector.load %arg2[%c0_3, %c0_4] : memref<4x32xf32, #tpu.memory_space<vmem>>, vector<4x32xf32>
    %cst = arith.constant dense<0.000000e+00> : vector<8x32xf32>
    %8 = tpu.matmul %6, %7, %cst {dimension_numbers = #tpu.dot_dimension_numbers<[1], [0], [0], [1], [0, 0, 1, 1], [], []>} : vector<8x4xf32>, vector<4x32xf32>, vector<8x32xf32> -> vector<8x32xf32>
    %9 = vector.broadcast %1 : vector<1x32xf32> to vector<8x32xf32>
    %10 = arith.addf %8, %9 : vector<8x32xf32>
    %cst_5 = arith.constant 0.000000e+00 : f32
    %11 = vector.broadcast %cst_5 : f32 to vector<8x32xf32>
    %12 = arith.maximumf %10, %11 : vector<8x32xf32>
    %c0_6 = arith.constant 0 : index
    %c0_7 = arith.constant 0 : index
    %13 = vector.load %arg3[%c0_6, %c0_7] : memref<32x32xf32, #tpu.memory_space<vmem>>, vector<32x32xf32>
    %cst_8 = arith.constant dense<0.000000e+00> : vector<8x32xf32>
    %14 = tpu.matmul %12, %13, %cst_8 {dimension_numbers = #tpu.dot_dimension_numbers<[1], [0], [0], [1], [0, 0, 1, 1], [], []>} : vector<8x32xf32>, vector<32x32xf32>, vector<8x32xf32> -> vector<8x32xf32>
    %15 = vector.broadcast %2 : vector<1x32xf32> to vector<8x32xf32>
    %16 = arith.addf %14, %15 : vector<8x32xf32>
    %cst_9 = arith.constant dense<0.000000e+00> : vector<8xf32>
    %17 = vector.multi_reduction <add>, %16, %cst_9 [1] : vector<8x32xf32> to vector<8xf32>
    %18 = vector.shape_cast %17 : vector<8xf32> to vector<8x1xf32>
    %cst_10 = arith.constant 3.200000e+01 : f32
    %19 = vector.broadcast %cst_10 : f32 to vector<8x1xf32>
    %20 = arith.divf %18, %19 : vector<8x1xf32>
    %21 = vector.broadcast %20 : vector<8x1xf32> to vector<8x32xf32>
    %22 = arith.subf %16, %21 : vector<8x32xf32>
    %23 = arith.mulf %22, %22 : vector<8x32xf32>
    %cst_11 = arith.constant dense<0.000000e+00> : vector<8xf32>
    %24 = vector.multi_reduction <add>, %23, %cst_11 [1] : vector<8x32xf32> to vector<8xf32>
    %25 = vector.shape_cast %24 : vector<8xf32> to vector<8x1xf32>
    %cst_12 = arith.constant 3.200000e+01 : f32
    %26 = vector.broadcast %cst_12 : f32 to vector<8x1xf32>
    %27 = arith.divf %25, %26 : vector<8x1xf32>
    %cst_13 = arith.constant 9.99999974E-6 : f32
    %28 = vector.broadcast %cst_13 : f32 to vector<8x1xf32>
    %29 = arith.addf %27, %28 : vector<8x1xf32>
    %30 = math.rsqrt %29 : vector<8x1xf32>
    %31 = vector.broadcast %30 : vector<8x1xf32> to vector<8x32xf32>
    %32 = arith.mulf %22, %31 : vector<8x32xf32>
    %33 = vector.broadcast %3 : vector<1x32xf32> to vector<8x32xf32>
    %34 = arith.mulf %32, %33 : vector<8x32xf32>
    %35 = vector.broadcast %4 : vector<1x32xf32> to vector<8x32xf32>
    %36 = arith.addf %34, %35 : vector<8x32xf32>
    %c0_14 = arith.constant 0 : index
    %c0_15 = arith.constant 0 : index
    %37 = vector.load %arg4[%c0_14, %c0_15] : memref<32x4xf32, #tpu.memory_space<vmem>>, vector<32x4xf32>
    %cst_16 = arith.constant dense<0.000000e+00> : vector<8x4xf32>
    %38 = tpu.matmul %36, %37, %cst_16 {dimension_numbers = #tpu.dot_dimension_numbers<[1], [0], [0], [1], [0, 0, 1, 1], [], []>} : vector<8x32xf32>, vector<32x4xf32>, vector<8x4xf32> -> vector<8x4xf32>
    %39 = vector.broadcast %5 : vector<1x4xf32> to vector<8x4xf32>
    %40 = arith.addf %38, %39 : vector<8x4xf32>
    %41 = math.absf %40 : vector<8x4xf32>
    %cst_17 = arith.constant 0.000000e+00 : f32
    %42 = vector.broadcast %cst_17 : f32 to vector<8x4xf32>
    %43 = arith.subf %42, %41 : vector<8x4xf32>
    %44 = math.exp %43 : vector<8x4xf32>
    %cst_18 = arith.constant 0.000000e+00 : f32
    %45 = vector.broadcast %cst_18 : f32 to vector<8x4xf32>
    %46 = arith.cmpf oge, %40, %45 : vector<8x4xf32>
    %cst_19 = arith.constant 1.000000e+00 : f32
    %47 = vector.broadcast %cst_19 : f32 to vector<8x4xf32>
    %48 = arith.select %46, %47, %44 : vector<8x4xi1>, vector<8x4xf32>
    %cst_20 = arith.constant 1.000000e+00 : f32
    %49 = vector.broadcast %cst_20 : f32 to vector<8x4xf32>
    %50 = arith.addf %49, %44 : vector<8x4xf32>
    %51 = arith.divf %48, %50 : vector<8x4xf32>
    %c0_21 = arith.constant 0 : index
    %c0_22 = arith.constant 0 : index
    %52 = vector.load %arg6[%c0_21, %c0_22] : memref<8x4xf32, #tpu.memory_space<vmem>>, vector<8x4xf32>
    tpu.vector_store %arg6[%c0_21, %c0_22], %51 {strides = array<i32>} : memref<8x4xf32, #tpu.memory_space<vmem>>, vector<8x4xf32>,
    return
  }
  func.func @transform_0(%arg0: i32) -> (i32, i32) {
    %c0_i32 = arith.constant 0 : i32
    %c0_i32_0 = arith.constant 0 : i32
    return %arg0, %c0_i32 : i32, i32
  }
  func.func @transform_1(%arg0: i32) -> (i32, i32) {
    %c0_i32 = arith.constant 0 : i32
    %c0_i32_0 = arith.constant 0 : i32
    %c0_i32_1 = arith.constant 0 : i32
    return %c0_i32, %c0_i32_0 : i32, i32
  }
  func.func @transform_2(%arg0: i32) -> (i32, i32) {
    %c0_i32 = arith.constant 0 : i32
    %c0_i32_0 = arith.constant 0 : i32
    %c0_i32_1 = arith.constant 0 : i32
    return %c0_i32, %c0_i32_0 : i32, i32
  }
  func.func @transform_3(%arg0: i32) -> (i32, i32) {
    %c0_i32 = arith.constant 0 : i32
    %c0_i32_0 = arith.constant 0 : i32
    %c0_i32_1 = arith.constant 0 : i32
    return %c0_i32, %c0_i32_0 : i32, i32
  }
  func.func @transform_4(%arg0: i32) -> (i32, i32) {
    %c0_i32 = arith.constant 0 : i32
    %c0_i32_0 = arith.constant 0 : i32
    %c0_i32_1 = arith.constant 0 : i32
    return %c0_i32, %c0_i32_0 : i32, i32
  }
  func.func @transform_5(%arg0: i32) -> (i32, i32) {
    %c0_i32 = arith.constant 0 : i32
    %c0_i32_0 = arith.constant 0 : i32
    return %arg0, %c0_i32 : i32, i32
  }
}

</mosaic_0001>

<llo_original>
// kernel: tpu_custom_call.1
$region0: #{tpu_custom_call.1}
  #allocation0 [shape = 'u32[]', space=smem, size = 0x4, offset = 0x4, fixed_abs, tag = 'smem constant byte address 0x4 - core index']
  #allocation1 [shape = 'u32[144,128]{1,0:T(1,128)}', space=vmem, size = 0x12000, scoped, tag = 'internal scratch']
  %s0 = inlined_call_operand.vmem [shape: f32[16,4], index: 0, kind: input, shape index: {}]
  %s1 = inlined_call_operand.vmem [shape: f32[4,32], index: 1, kind: input, shape index: {}]
  %s2 = inlined_call_operand.vmem [shape: f32[32,32], index: 2, kind: input, shape index: {}]
  %s3 = inlined_call_operand.vmem [shape: f32[32,4], index: 3, kind: input, shape index: {}]
  %s4 = inlined_call_operand.vmem [shape: f32[8,32], index: 4, kind: input, shape index: {}]
  %s5 = inlined_call_operand.vmem [shape: f32[16,4], index: 5, kind: output, shape index: {}]
  %s6 = sld [smem:[#allocation0]]
  $region53: #{tpu_custom_call.1} parent=0
    _
  %s8 = ssub.s32 1, %s6
  %s9 = scalar_select 0, %s8, %s6
  loop: start=0, step=1, limit=4
  $region2: #{tpu_custom_call.1} parent=0 // loop_pre_header
    _
  $region3: #{tpu_custom_call.1} parent=0 // loop_header
    %s11 = sphi 0, %s15
    %p12 = scmp.ge.s32.totalorder %s11, 4
    %s21 = sphi 0, %s23
    %s24 = sphi 0, %s21
    %s25 = sphi 0, %s24
    %s41 = sphi 0, %s25
    %s45 = sphi 0, %s45
    %s47 = sphi 0, %s45
    %s48 = sphi 0, %s47
    %s62 = sphi 0, %s48
    %s66 = sphi 0, %s66
    %s68 = sphi 0, %s66
    %s69 = sphi 0, %s68
    %s83 = sphi 0, %s69
    %s87 = sphi 0, %s87
    %s89 = sphi 0, %s87
    %s90 = sphi 0, %s89
    %s104 = sphi 0, %s90
    %s108 = sphi 0, %s108
    %s110 = sphi 0, %s108
    %s111 = sphi 0, %s110
    %s125 = sphi 0, %s111
    %s131 = sphi 0, %s133
    %s134 = sphi 0, %s131
    %s135 = sphi 0, %s134
    %s151 = sphi 0, %s135
  $region4: #{tpu_custom_call.1} parent=0 // loop_header_branch
    %14 = sbr.rel (%p12) target = $region8
  $region5: #{tpu_custom_call.1} parent=0 // loop_body
    %s16 = ssub.s32 %s11, 1
    %s17 = ssub.s32 %s11, 2
    %s18 = sadd.s32 %s11, 1
    %s19 = ssub.s32 %s11, %s18
    %p20 = scmp.eq.s32.totalorder %s19, 0
    %s22 = sadd.s32 %s21, 1
    %s23 = scalar_select %p20, %s21, %s22
    %p26 = pneg %p20
    %p27 = scmp.eq.s32.totalorder %s11, 1
    %p28 = por %p26, %p27
    %p29 = scmp.ne.s32.totalorder %s21, %s24
    %p30 = scmp.eq.s32.totalorder %s11, 0
    %p31 = por %p29, %p30
    %p32 = scmp.ne.s32.totalorder %s21, %s24
    %p33 = scmp.eq.s32.totalorder %s16, 1
    %p34 = por %p32, %p33
    %p35 = scmp.ne.s32.totalorder %s24, %s25
    %p36 = scmp.eq.s32.totalorder %s16, 0
    %p37 = por %p35, %p36
    %p38 = scmp.ne.s32.totalorder %s24, %s25
    %p39 = scmp.eq.s32.totalorder %s17, 1
    %p40 = por %p38, %p39
    %p42 = scmp.ne.s32.totalorder %s25, %s41
    %p43 = scmp.eq.s32.totalorder %s17, 0
    %p44 = por %p42, %p43
    %s46 = sadd.s32 %s45, 1
    %p49 = scmp.eq.s32.totalorder %s11, 1
    %p50 = scmp.ne.s32.totalorder %s45, %s47
    %p51 = scmp.eq.s32.totalorder %s11, 0
    %p52 = por %p50, %p51
    %p53 = scmp.ne.s32.totalorder %s45, %s47
    %p54 = scmp.eq.s32.totalorder %s16, 1
    %p55 = por %p53, %p54
    %p56 = scmp.ne.s32.totalorder %s47, %s48
    %p57 = scmp.eq.s32.totalorder %s16, 0
    %p58 = por %p56, %p57
    %p59 = scmp.ne.s32.totalorder %s47, %s48
    %p60 = scmp.eq.s32.totalorder %s17, 1
    %p61 = por %p59, %p60
    %p63 = scmp.ne.s32.totalorder %s48, %s62
    %p64 = scmp.eq.s32.totalorder %s17, 0
    %p65 = por %p63, %p64
    %s67 = sadd.s32 %s66, 1
    %p70 = scmp.eq.s32.totalorder %s11, 1
    %p71 = scmp.ne.s32.totalorder %s66, %s68
    %p72 = scmp.eq.s32.totalorder %s11, 0
    %p73 = por %p71, %p72
    %p74 = scmp.ne.s32.totalorder %s66, %s68
    %p75 = scmp.eq.s32.totalorder %s16, 1
    %p76 = por %p74, %p75
    %p77 = scmp.ne.s32.totalorder %s68, %s69
    %p78 = scmp.eq.s32.totalorder %s16, 0
    %p79 = por %p77, %p78
    %p80 = scmp.ne.s32.totalorder %s68, %s69
    %p81 = scmp.eq.s32.totalorder %s17, 1
    %p82 = por %p80, %p81
    %p84 = scmp.ne.s32.totalorder %s69, %s83
    %p85 = scmp.eq.s32.totalorder %s17, 0
    %p86 = por %p84, %p85
    %s88 = sadd.s32 %s87, 1
    %p91 = scmp.eq.s32.totalorder %s11, 1
    %p92 = scmp.ne.s32.totalorder %s87, %s89
    %p93 = scmp.eq.s32.totalorder %s11, 0
    %p94 = por %p92, %p93
    %p95 = scmp.ne.s32.totalorder %s87, %s89
    %p96 = scmp.eq.s32.totalorder %s16, 1
    %p97 = por %p95, %p96
    %p98 = scmp.ne.s32.totalorder %s89, %s90
    %p99 = scmp.eq.s32.totalorder %s16, 0
    %p100 = por %p98, %p99
    %p101 = scmp.ne.s32.totalorder %s89, %s90
    %p102 = scmp.eq.s32.totalorder %s17, 1
    %p103 = por %p101, %p102
    %p105 = scmp.ne.s32.totalorder %s90, %s104
    %p106 = scmp.eq.s32.totalorder %s17, 0
    %p107 = por %p105, %p106
    %s109 = sadd.s32 %s108, 1
    %p112 = scmp.eq.s32.totalorder %s11, 1
    %p113 = scmp.ne.s32.totalorder %s108, %s110
    %p114 = scmp.eq.s32.totalorder %s11, 0
    %p115 = por %p113, %p114
    %p116 = scmp.ne.s32.totalorder %s108, %s110
    %p117 = scmp.eq.s32.totalorder %s16, 1
    %p118 = por %p116, %p117
    %p119 = scmp.ne.s32.totalorder %s110, %s111
    %p120 = scmp.eq.s32.totalorder %s16, 0
    %p121 = por %p119, %p120
    %p122 = scmp.ne.s32.totalorder %s110, %s111
    %p123 = scmp.eq.s32.totalorder %s17, 1
    %p124 = por %p122, %p123
    %p126 = scmp.ne.s32.totalorder %s111, %s125
    %p127 = scmp.eq.s32.totalorder %s17, 0
    %p128 = por %p126, %p127
    %s129 = ssub.s32 %s11, %s18
    %p130 = scmp.eq.s32.totalorder %s129, 0
    %s132 = sadd.s32 %s131, 1
    %s133 = scalar_select %p130, %s131, %s132
    %p136 = pneg %p130
    %p137 = scmp.eq.s32.totalorder %s11, 1
    %p138 = por %p136, %p137
    %p139 = scmp.ne.s32.totalorder %s131, %s134
    %p140 = scmp.eq.s32.totalorder %s11, 0
    %p141 = por %p139, %p140
    %p142 = scmp.ne.s32.totalorder %s131, %s134
    %p143 = scmp.eq.s32.totalorder %s16, 1
    %p144 = por %p142, %p143
    %p145 = scmp.ne.s32.totalorder %s134, %s135
    %p146 = scmp.eq.s32.totalorder %s16, 0
    %p147 = por %p145, %p146
    %p148 = scmp.ne.s32.totalorder %s134, %s135
    %p149 = scmp.eq.s32.totalorder %s17, 1
    %p150 = por %p148, %p149
    %p152 = scmp.ne.s32.totalorder %s135, %s151
    %p153 = scmp.eq.s32.totalorder %s17, 0
    %p154 = por %p152, %p153
    %p155 = scmp.le.s32.totalorder 1, %s11
    %p156 = scmp.lt.s32.totalorder %s11, 3
    %p157 = pnand %p155, %p156
    %p158 = pneg %p157
    // Predicated region
    $region9: #{tpu_custom_call.1} parent=5 // pred_check
      _
    $region10: #{tpu_custom_call.1} parent=5 // pred_check_branch
      %160 = sbr.rel (%p157) target = $region12
    $region11: #{tpu_custom_call.1} parent=5 // pred_region
      %s161 = ssub.s32 %s11, 1
      // Predicated region
      $region13: #{tpu_custom_call.1} parent=11 // pred_check
        %p162 = pneg %p58
      $region14: #{tpu_custom_call.1} parent=11 // pred_check_branch
        %164 = sbr.rel (%p162) target = $region16
      $region15: #{tpu_custom_call.1} parent=11 // pred_region
        _
      $region16: #{tpu_custom_call.1} parent=11 // pred_fallthru
        _
      // Predicated region
      $region17: #{tpu_custom_call.1} parent=11 // pred_check
        %p165 = pneg %p79
      $region18: #{tpu_custom_call.1} parent=11 // pred_check_branch
        %167 = sbr.rel (%p165) target = $region20
      $region19: #{tpu_custom_call.1} parent=11 // pred_region
        _
      $region20: #{tpu_custom_call.1} parent=11 // pred_fallthru
        _
      // Predicated region
      $region21: #{tpu_custom_call.1} parent=11 // pred_check
        %p168 = pneg %p100
      $region22: #{tpu_custom_call.1} parent=11 // pred_check_branch
        %170 = sbr.rel (%p168) target = $region24
      $region23: #{tpu_custom_call.1} parent=11 // pred_region
        _
      $region24: #{tpu_custom_call.1} parent=11 // pred_fallthru
        _
      // Predicated region
      $region25: #{tpu_custom_call.1} parent=11 // pred_check
        %p171 = pneg %p121
      $region26: #{tpu_custom_call.1} parent=11 // pred_check_branch
        %173 = sbr.rel (%p171) target = $region28
      $region27: #{tpu_custom_call.1} parent=11 // pred_region
        _
      $region28: #{tpu_custom_call.1} parent=11 // pred_fallthru
        _
    $region12: #{tpu_custom_call.1} parent=5 // pred_fallthru
      _
    %p174 = scmp.lt.s32.totalorder %s11, 2
    // Predicated region
    $region29: #{tpu_custom_call.1} parent=5 // pred_check
      %p175 = pneg %p174
    $region30: #{tpu_custom_call.1} parent=5 // pred_check_branch
      %177 = sbr.rel (%p175) target = $region32
    $region31: #{tpu_custom_call.1} parent=5 // pred_region
      // Predicated region
      $region33: #{tpu_custom_call.1} parent=31 // pred_check
        %p178 = pneg %p31
      $region34: #{tpu_custom_call.1} parent=31 // pred_check_branch
        %180 = sbr.rel (%p178) target = $region36
      $region35: #{tpu_custom_call.1} parent=31 // pred_region
        %p181 = scmp.lt.s32.totalorder %s11, 1
        %s182 = scalar_select %p181, %s11, 1
        %s183 = smul.addr %s182, 8
        %s184 = scalar_lea.vmem %s0, %s183
      $region36: #{tpu_custom_call.1} parent=31 // pred_fallthru
        _
    $region32: #{tpu_custom_call.1} parent=5 // pred_fallthru
      _
    %p185 = scmp.le.s32.totalorder 1, %s11
    %p186 = scmp.lt.s32.totalorder %s11, 3
    %p187 = pnand %p185, %p186
    %p188 = pneg %p187
    // Predicated region
    $region37: #{tpu_custom_call.1} parent=5 // pred_check
      _
    $region38: #{tpu_custom_call.1} parent=5 // pred_check_branch
      %190 = sbr.rel (%p187) target = $region40
    $region39: #{tpu_custom_call.1} parent=5 // pred_region
      %s191 = ssub.s32 %s11, 1
      %p192 = scmp.lt.s32.totalorder %s16, 1
      %s193 = scalar_select %p192, %s16, 1
      %s194 = smul.addr %s193, 8
      %s195 = scalar_lea.vmem %s0, %s194
      %p196 = pneg %p37
      %p197 = pneg %p34
      %p198 = pneg %p58
      %p199 = pneg %p55
      %p200 = pneg %p79
      %p201 = pneg %p76
      %p202 = pneg %p100
      %p203 = pneg %p97
      %p204 = pneg %p121
      %p205 = pneg %p118
      %p206 = pneg %p147
      %p207 = pneg %p144
      %p208 = scmp.lt.s32.totalorder %s16, 1
      %s209 = scalar_select %p208, %s16, 1
      %s210 = smul.addr %s209, 8
      %s211 = scalar_lea.vmem %s5, %s210
      %p212 = scmp.lt.s32.totalorder %s16, 1
      %s213 = scalar_select %p212, %s16, 1
      %s214 = smul.addr %s213, 8
      %s215 = scalar_lea.vmem %s0, %s214
      %p216 = scmp.lt.s32.totalorder %s16, 1
      %s217 = scalar_select %p216, %s16, 1
      %s218 = smul.addr %s217, 8
      %s219 = scalar_lea.vmem %s5, %s218
      %v220 = vld [vmem:[%s4] sm:$0xff]
      %v221 = vld [vmem:[%s215] sm:$0xff]
      %v222 = vld [vmem:[%s1] sm:$0xf]
      %v223 = vlaneseq
      %v224 = vshrl.u32 %v223, 7
      %v225 = vsub.s32 0, %v224
      %v226 = vrot.slane %v220, %v225
      %vm227 = vcmask 31744
      %v229 = vsel %vm227, %v221, 0
      %vm231 = vcmask 1043456
      %v233 = vsel %vm231, %v222, 0
      %235 = vmatprep.subr.mxu0 0.0
      %236 = vmatpush1.msra.mxu0 %v233
      %237 = vmatprep.subr.mxu0 0.0
      %238 = vmatpush1.msra.mxu0 0.0
      %239 = vmatprep.subr.mxu0 0.0
      %240 = vmatpush1.msra.mxu0 0.0
      %241 = vmatprep.subr.mxu0 0.0
      %242 = vmatpush1.msra.mxu0 0.0
      %243 = vmatprep.subr.mxu0 0.0
      %244 = vmatpush1.msra.mxu0 0.0
      %245 = vmatprep.subr.mxu0 0.0
      %246 = vmatpush1.msra.mxu0 0.0
      %247 = vmatprep.subr.mxu0 0.0
      %248 = vmatpush1.msra.mxu0 0.0
      %249 = vmatprep.subr.mxu0 0.0
      %250 = vmatpush1.msra.mxu0 0.0
      %251 = vmatprep.subr.mxu0 0.0
      %252 = vmatpush1.msra.mxu0 0.0
      %253 = vmatprep.subr.mxu0 0.0
      %254 = vmatpush1.msra.mxu0 0.0
      %255 = vmatprep.subr.mxu0 0.0
      %256 = vmatpush1.msra.mxu0 0.0
      %257 = vmatprep.subr.mxu0 0.0
      %258 = vmatpush1.msra.mxu0 0.0
      %259 = vmatprep.subr.mxu0 0.0
      %260 = vmatpush1.msra.mxu0 0.0
      %261 = vmatprep.subr.mxu0 0.0
      %262 = vmatpush1.msra.mxu0 0.0
      %263 = vmatprep.subr.mxu0 0.0
      %264 = vmatpush1.msra.mxu0 0.0
      %265 = vmatprep.subr.mxu0 0.0
      %266 = vmatpush1.msra.mxu0 0.0
      %267 = vmatprep.subr.mxu0 0.0
      %268 = vmatpush1.msra.mxu0 0.0
      %269 = vmatprep.subr.mxu0 0.0
      %270 = vmatpush1.msra.mxu0 0.0
      %271 = vmatprep.subr.mxu0 0.0
      %272 = vmatpush1.msra.mxu0 0.0
      %273 = vmatprep.subr.mxu0 0.0
      %274 = vmatpush1.msra.mxu0 0.0
      %275 = vmatprep.subr.mxu0 0.0
      %276 = vmatpush1.msra.mxu0 0.0
      %277 = vmatprep.subr.mxu0 0.0
      %278 = vmatpush1.msra.mxu0 0.0
      %279 = vmatprep.subr.mxu0 0.0
      %280 = vmatpush1.msra.mxu0 0.0
      %281 = vmatprep.subr.mxu0 0.0
      %282 = vmatpush1.msra.mxu0 0.0
      %283 = vmatprep.subr.mxu0 0.0
      %284 = vmatpush1.msra.mxu0 0.0
      %285 = vmatprep.subr.mxu0 0.0
      %286 = vmatpush1.msra.mxu0 0.0
      %287 = vmatprep.subr.mxu0 0.0
      %288 = vmatpush1.msra.mxu0 0.0
      %289 = vmatprep.subr.mxu0 0.0
      %290 = vmatpush1.msra.mxu0 0.0
      %291 = vmatprep.subr.mxu0 0.0
      %292 = vmatpush1.msra.mxu0 0.0
      %293 = vmatprep.subr.mxu0 0.0
      %294 = vmatpush1.msra.mxu0 0.0
      %295 = vmatprep.subr.mxu0 0.0
      %296 = vmatpush1.msra.mxu0 0.0
      %297 = vmatprep.subr.mxu0 0.0
      %298 = vmatpush1.msra.mxu0 0.0
      %299 = vmatprep.mubr.f32.mxu0 0.0
      %300 = vmatmul.mubr.f32.gmra.mrb[0].mxu0 %v229
      %v301 = vpop.f32.mrb[0].mxu0
      %v302 = vadd.f32 %v226, %v301
      %v303 = vpop.f32.mrb[0].mxu0
      %304 = vdwg.mxu0
      %v305 = vmax.f32 %v302, 0.0
      %v306 = vld [vmem:[%s2] sm:$0xff]
      %v307 = vld [vmem:[%s2 + $0x8] sm:$0xff]
      %v308 = vld [vmem:[%s2 + $0x10] sm:$0xff]
      %v309 = vld [vmem:[%s2 + $0x18] sm:$0xff]
      %v310 = vlaneseq
      %v311 = vshrl.u32 %v310, 7
      %v312 = vsub.s32 1, %v311
      %v313 = vrot.slane %v220, %v312
      %vm314 = vcmask 261120
      %v316 = vsel %vm314, %v305, 0
      %318 = vmatprep.subr.mxu0 0.0
      %319 = vmatpush1.msra.mxu0 %v306
      %320 = vmatprep.subr.mxu0 0.0
      %321 = vmatpush1.msra.mxu0 %v307
      %322 = vmatprep.subr.mxu0 0.0
      %323 = vmatpush1.msra.mxu0 %v308
      %324 = vmatprep.subr.mxu0 0.0
      %325 = vmatpush1.msra.mxu0 %v309
      %326 = vmatprep.subr.mxu0 0.0
      %327 = vmatpush1.msra.mxu0 0.0
      %328 = vmatprep.subr.mxu0 0.0
      %329 = vmatpush1.msra.mxu0 0.0
      %330 = vmatprep.subr.mxu0 0.0
      %331 = vmatpush1.msra.mxu0 0.0
      %332 = vmatprep.subr.mxu0 0.0
      %333 = vmatpush1.msra.mxu0 0.0
      %334 = vmatprep.subr.mxu0 0.0
      %335 = vmatpush1.msra.mxu0 0.0
      %336 = vmatprep.subr.mxu0 0.0
      %337 = vmatpush1.msra.mxu0 0.0
      %338 = vmatprep.subr.mxu0 0.0
      %339 = vmatpush1.msra.mxu0 0.0
      %340 = vmatprep.subr.mxu0 0.0
      %341 = vmatpush1.msra.mxu0 0.0
      %342 = vmatprep.subr.mxu0 0.0
      %343 = vmatpush1.msra.mxu0 0.0
      %344 = vmatprep.subr.mxu0 0.0
      %345 = vmatpush1.msra.mxu0 0.0
      %346 = vmatprep.subr.mxu0 0.0
      %347 = vmatpush1.msra.mxu0 0.0
      %348 = vmatprep.subr.mxu0 0.0
      %349 = vmatpush1.msra.mxu0 0.0
      %350 = vmatprep.subr.mxu0 0.0
      %351 = vmatpush1.msra.mxu0 0.0
      %352 = vmatprep.subr.mxu0 0.0
      %353 = vmatpush1.msra.mxu0 0.0
      %354 = vmatprep.subr.mxu0 0.0
      %355 = vmatpush1.msra.mxu0 0.0
      %356 = vmatprep.subr.mxu0 0.0
      %357 = vmatpush1.msra.mxu0 0.0
      %358 = vmatprep.subr.mxu0 0.0
      %359 = vmatpush1.msra.mxu0 0.0
      %360 = vmatprep.subr.mxu0 0.0
      %361 = vmatpush1.msra.mxu0 0.0
      %362 = vmatprep.subr.mxu0 0.0
      %363 = vmatpush1.msra.mxu0 0.0
      %364 = vmatprep.subr.mxu0 0.0
      %365 = vmatpush1.msra.mxu0 0.0
      %366 = vmatprep.subr.mxu0 0.0
      %367 = vmatpush1.msra.mxu0 0.0
      %368 = vmatprep.subr.mxu0 0.0
      %369 = vmatpush1.msra.mxu0 0.0
      %370 = vmatprep.subr.mxu0 0.0
      %371 = vmatpush1.msra.mxu0 0.0
      %372 = vmatprep.subr.mxu0 0.0
      %373 = vmatpush1.msra.mxu0 0.0
      %374 = vmatprep.subr.mxu0 0.0
      %375 = vmatpush1.msra.mxu0 0.0
      %376 = vmatprep.subr.mxu0 0.0
      %377 = vmatpush1.msra.mxu0 0.0
      %378 = vmatprep.subr.mxu0 0.0
      %379 = vmatpush1.msra.mxu0 0.0
      %380 = vmatprep.subr.mxu0 0.0
      %381 = vmatpush1.msra.mxu0 0.0
      %382 = vmatprep.mubr.f32.mxu0 0.0
      %383 = vmatmul.mubr.f32.gmra.mrb[0].mxu0 %v316
      %v384 = vpop.f32.mrb[0].mxu0
      %v385 = vadd.f32 %v313, %v384
      %v386 = vpop.f32.mrb[0].mxu0
      %387 = vdwg.mxu0
      %v388 = vsel %vm314, %v385, 0.0
      %389 = vadd.xlane.f32.xlu0 %v388
      %v390 = vpop.xlane.xlu0 %389
      %v391 = vrcp.pop 32.0
      %v392 = vmul.f32 %v390, %v391
      %v393 = vsub.f32 %v385, %v392
      %v394 = vmul.f32 %v393, %v393
      %v395 = vsel %vm314, %v394, 0.0
      %396 = vadd.xlane.f32.xlu0 %v395
      %v397 = vpop.xlane.xlu0 %396
      %v398 = vmul.f32 %v397, %v391
      %v399 = vadd.f32 %v398, 1e-05
      %v400 = vrsqrt.pop %v399
      %v401 = vmul.f32 %v393, %v400
      %v402 = vlaneseq
      %v403 = vshrl.u32 %v402, 7
      %v404 = vsub.s32 2, %v403
      %v405 = vrot.slane %v220, %v404
      %v406 = vmul.f32 %v401, %v405
      %v407 = vlaneseq
      %v408 = vshrl.u32 %v407, 7
      %v409 = vsub.s32 3, %v408
      %v410 = vrot.slane %v220, %v409
      %v411 = vadd.f32 %v406, %v410
      %v412 = vld [vmem:[%s3] sm:$0xff]
      %v413 = vld [vmem:[%s3 + $0x8] sm:$0xff]
      %v414 = vld [vmem:[%s3 + $0x10] sm:$0xff]
      %v415 = vld [vmem:[%s3 + $0x18] sm:$0xff]
      %v416 = vlaneseq
      %v417 = vshrl.u32 %v416, 7
      %v418 = vsub.s32 4, %v417
      %v419 = vrot.slane %v220, %v418
      %v421 = vsel %vm314, %v411, 0
      %423 = vmatprep.subr.mxu0 0.0
      %424 = vmatpush1.msra.mxu0 %v412
      %425 = vmatprep.subr.mxu0 0.0
      %426 = vmatpush1.msra.mxu0 %v413
      %427 = vmatprep.subr.mxu0 0.0
      %428 = vmatpush1.msra.mxu0 %v414
      %429 = vmatprep.subr.mxu0 0.0
      %430 = vmatpush1.msra.mxu0 %v415
      %431 = vmatprep.subr.mxu0 0.0
      %432 = vmatpush1.msra.mxu0 0.0
      %433 = vmatprep.subr.mxu0 0.0
      %434 = vmatpush1.msra.mxu0 0.0
      %435 = vmatprep.subr.mxu0 0.0
      %436 = vmatpush1.msra.mxu0 0.0
      %437 = vmatprep.subr.mxu0 0.0
      %438 = vmatpush1.msra.mxu0 0.0
      %439 = vmatprep.subr.mxu0 0.0
      %440 = vmatpush1.msra.mxu0 0.0
      %441 = vmatprep.subr.mxu0 0.0
      %442 = vmatpush1.msra.mxu0 0.0
      %443 = vmatprep.subr.mxu0 0.0
      %444 = vmatpush1.msra.mxu0 0.0
      %445 = vmatprep.subr.mxu0 0.0
      %446 = vmatpush1.msra.mxu0 0.0
      %447 = vmatprep.subr.mxu0 0.0
      %448 = vmatpush1.msra.mxu0 0.0
      %449 = vmatprep.subr.mxu0 0.0
      %450 = vmatpush1.msra.mxu0 0.0
      %451 = vmatprep.subr.mxu0 0.0
      %452 = vmatpush1.msra.mxu0 0.0
      %453 = vmatprep.subr.mxu0 0.0
      %454 = vmatpush1.msra.mxu0 0.0
      %455 = vmatprep.subr.mxu0 0.0
      %456 = vmatpush1.msra.mxu0 0.0
      %457 = vmatprep.subr.mxu0 0.0
      %458 = vmatpush1.msra.mxu0 0.0
      %459 = vmatprep.subr.mxu0 0.0
      %460 = vmatpush1.msra.mxu0 0.0
      %461 = vmatprep.subr.mxu0 0.0
      %462 = vmatpush1.msra.mxu0 0.0
      %463 = vmatprep.subr.mxu0 0.0
      %464 = vmatpush1.msra.mxu0 0.0
      %465 = vmatprep.subr.mxu0 0.0
      %466 = vmatpush1.msra.mxu0 0.0
      %467 = vmatprep.subr.mxu0 0.0
      %468 = vmatpush1.msra.mxu0 0.0
      %469 = vmatprep.subr.mxu0 0.0
      %470 = vmatpush1.msra.mxu0 0.0
      %471 = vmatprep.subr.mxu0 0.0
      %472 = vmatpush1.msra.mxu0 0.0
      %473 = vmatprep.subr.mxu0 0.0
      %474 = vmatpush1.msra.mxu0 0.0
      %475 = vmatprep.subr.mxu0 0.0
      %476 = vmatpush1.msra.mxu0 0.0
      %477 = vmatprep.subr.mxu0 0.0
      %478 = vmatpush1.msra.mxu0 0.0
      %479 = vmatprep.subr.mxu0 0.0
      %480 = vmatpush1.msra.mxu0 0.0
      %481 = vmatprep.subr.mxu0 0.0
      %482 = vmatpush1.msra.mxu0 0.0
      %483 = vmatprep.subr.mxu0 0.0
      %484 = vmatpush1.msra.mxu0 0.0
      %485 = vmatprep.subr.mxu0 0.0
      %486 = vmatpush1.msra.mxu0 0.0
      %487 = vmatprep.mubr.f32.mxu0 0.0
      %488 = vmatmul.mubr.f32.gmra.mrb[0].mxu0 %v421
      %v489 = vpop.f32.mrb[0].mxu0
      %v490 = vadd.f32 %v419, %v489
      %v491 = vpop.f32.mrb[0].mxu0
      %492 = vdwg.mxu0
      %v493 = vand.u32 2147483647, %v490
      %v494 = vsub.f32 0.0, %v493
      %v495 = vmul.f32 %v494, 1.442695
      %v496 = vpow.pop %v495
      %vm497 = vcmp.ge.f32.partialorder %v490, 0.0
      %v498 = vsel %vm497, 1.0, %v496
      %v499 = vadd.f32 %v496, 1.0
      %v500 = vrcp.pop %v499
      %v501 = vmul.f32 %v498, %v500
      %502 = vst.msk [vmem:[%s219] sm:$0xff] %vm227, %v501
      %p503 = scmp.lt.s32.totalorder %s16, 1
      %s504 = scalar_select %p503, %s16, 1
      %s505 = smul.addr %s504, 8
      %s506 = scalar_lea.vmem %s5, %s505
      // Predicated region
      $region41: #{tpu_custom_call.1} parent=39 // pred_check
        %p507 = pneg %p144
      $region42: #{tpu_custom_call.1} parent=39 // pred_check_branch
        %509 = sbr.rel (%p507) target = $region44
      $region43: #{tpu_custom_call.1} parent=39 // pred_region
        _
      $region44: #{tpu_custom_call.1} parent=39 // pred_fallthru
        _
    $region40: #{tpu_custom_call.1} parent=5 // pred_fallthru
      _
    %p510 = scmp.le.s32.totalorder 2, %s11
    // Predicated region
    $region45: #{tpu_custom_call.1} parent=5 // pred_check
      %p511 = pneg %p510
    $region46: #{tpu_custom_call.1} parent=5 // pred_check_branch
      %513 = sbr.rel (%p511) target = $region48
    $region47: #{tpu_custom_call.1} parent=5 // pred_region
      %s514 = ssub.s32 %s11, 2
      // Predicated region
      $region49: #{tpu_custom_call.1} parent=47 // pred_check
        %p515 = pneg %p150
      $region50: #{tpu_custom_call.1} parent=47 // pred_check_branch
        %517 = sbr.rel (%p515) target = $region52
      $region51: #{tpu_custom_call.1} parent=47 // pred_region
        %p518 = scmp.lt.s32.totalorder %s17, 1
        %s519 = scalar_select %p518, %s17, 1
        %s520 = smul.addr %s519, 8
        %s521 = scalar_lea.vmem %s5, %s520
      $region52: #{tpu_custom_call.1} parent=47 // pred_fallthru
        _
    $region48: #{tpu_custom_call.1} parent=5 // pred_fallthru
      _
  $region6: #{tpu_custom_call.1} parent=0 // loop_footer
    %s15 = sadd.s32 1, %s11
  $region7: #{tpu_custom_call.1} parent=0 // loop_footer_branch
    %10 = sbr.rel target = $region3
  $region8: #{tpu_custom_call.1} parent=0 // loop_exit
    _

</llo_original>
